<compile_context>
chip_gen: v5e
topology: v5e:2x2
jax: 0.10.0
libtpu: 0.0.40
codegen_flags: <defaults>
</compile_context>

<pallas_src>
import functools

import jax
import jax.numpy as jnp
from jax.experimental import pallas as pl
from jax.experimental.pallas import tpu as pltpu

SUBLANE = 8


def mlp_kernel(xt_ref, w_ref, b_ref, o_ref):
    # xt_ref: (F, TILE_B)  bf16  -- batch tile, batch on lanes
    # w_ref : (8, F)       bf16  -- row 0 = fused (W1@W2@W3)^T, rows 1..7 zero
    # b_ref : (1, 1)       f32   -- fused bias, SMEM scalar
    # o_ref : (1, TILE_B)  f32   -- lane-dense output slab
    z = jnp.dot(w_ref[...], xt_ref[...],
                preferred_element_type=jnp.float32)    # (8, TILE_B), f32 acc
    z = z[0:1, :] + b_ref[0, 0]                        # (1, TILE_B)
    o_ref[...] = jax.nn.sigmoid(z)                     # stable logistic (EUP)


def fuse_params(params):
    """Fold fc1/fc2/fc3 (no intermediate nonlinearity) into one affine map."""
    w1, b1, w2, b2, w3, b3 = params
    w_eff = w1 @ w2 @ w3                      # (F, 1)
    b_eff = (b1 @ w2 + b2) @ w3 + b3          # (1, 1)
    f = w_eff.shape[0]
    # Pad M to one full sublane tile; only row 0 carries data.
    w_row = jnp.zeros((SUBLANE, f), jnp.float32).at[0].set(w_eff[:, 0])
    return w_row.astype(jnp.bfloat16), b_eff.astype(jnp.float32)


def mlp_forward_pretransposed(xt, w_row, b_eff, *, tile_b=1024):
    """Forward pass on a pre-transposed input.

    xt:    (F, B) bf16, batch on the lane axis (preferred producer layout).
    Returns (B, 1) f32 sigmoid outputs.
    """
    f, b = xt.shape
    n_tiles = pl.cdiv(b, tile_b)   # ragged last tile handled by Pallas masking

    out_row = pl.pallas_call(
        mlp_kernel,
        out_shape=jax.ShapeDtypeStruct((1, b), jnp.float32),
        grid=(n_tiles,),
        in_specs=[
            pl.BlockSpec((f, tile_b), lambda i: (0, i)),        # batch tile
            pl.BlockSpec((SUBLANE, f), lambda i: (0, 0)),       # resident weight
            pl.BlockSpec(memory_space=pltpu.MemorySpace.SMEM),  # scalar bias
        ],
        out_specs=pl.BlockSpec((1, tile_b), lambda i: (0, i)),
        compiler_params=pltpu.CompilerParams(
            dimension_semantics=("parallel",),  # independent batch tiles
        ),
        cost_estimate=pl.CostEstimate(
            flops=2 * SUBLANE * f * b,
            transcendentals=b,
            bytes_accessed=b * f * 2 + SUBLANE * f * 2 + b * 4,
        ),
    )(xt, w_row, b_eff)

    return out_row.reshape(b, 1)


@functools.partial(jax.jit, static_argnames=("tile_b",))
def mlp_forward(x, w_row, b_eff, *, tile_b=1024):
    """Forward pass matching the PyTorch layout: x is (B, F) f32."""
    # Cast first so the transpose moves 2 B/elem.  Ideally the upstream
    # pipeline would already produce (F, B) bf16 and call
    # mlp_forward_pretransposed directly, halving end-to-end HBM traffic.
    xt = x.astype(jnp.bfloat16).T              # (F, B) bf16
    return mlp_forward_pretransposed(xt, w_row, b_eff, tile_b=tile_b)


def init_linear(key, fan_in, fan_out):
    # Matches PyTorch nn.Linear default init: U(-1/sqrt(fan_in), 1/sqrt(fan_in)).
    kw, kb = jax.random.split(key)
    bound = 1.0 / jnp.sqrt(jnp.float32(fan_in))
    # Stored as [in, out] (transposed vs. PyTorch's [out, in]).
    w = jax.random.uniform(kw, (fan_in, fan_out), jnp.float32, -bound, bound)
    b = jax.random.uniform(kb, (1, fan_out), jnp.float32, -bound, bound)
    return w, b


if __name__ == "__main__":
    feature_num = 32   # stand-in for len(X[0])
    out_num = 1
    batch = 1500       # 2 grid steps at tile_b=1024 (v7x gets both cores) with
                       # a ragged last tile (exercises masked input/output).

    key = jax.random.PRNGKey(0)
    k_x, k1, k2, k3 = jax.random.split(key, 4)

    # Inputs in [0, 1], mimicking MinMaxScaler-normalized features.
    x = jax.random.uniform(k_x, (batch, feature_num), jnp.float32)

    w1, b1 = init_linear(k1, feature_num, 50)
    w2, b2 = init_linear(k2, 50, 20)
    w3, b3 = init_linear(k3, 20, out_num)
    params = (w1, b1, w2, b2, w3, b3)

    # Host/XLA-side one-time param fusion, then the Pallas forward.
    w_row, b_eff = fuse_params(params)
    out = mlp_forward(x, w_row, b_eff, tile_b=1024)
    out = jax.block_until_ready(out)

    # Pure-JAX f32 reference of the original (unfused) forward pass.
    ref = jax.nn.sigmoid(((x @ w1 + b1) @ w2 + b2) @ w3 + b3)
    assert out.shape == (batch, out_num)
    assert jnp.allclose(out, ref, atol=1e-2, rtol=0.0), float(
        jnp.max(jnp.abs(out - ref)))

    print("KERNEL_OK")
</pallas_src>

<mosaic_0001>
module attributes {stable_mosaic.version = 11 : i64} {
  func.func @mlp_kernel(%arg0: i32, %arg1: memref<32x1024xbf16, #tpu.memory_space<vmem>>, %arg2: memref<8x32xbf16, #tpu.memory_space<vmem>>, %arg3: memref<1x1xf32, #tpu.memory_space<smem>>, %arg4: memref<1x1024xf32, #tpu.memory_space<vmem>>) attributes {dimension_semantics = [#tpu.dimension_semantics<parallel>], iteration_bounds = array<i64: 2>, scalar_prefetch = 0 : i64, scratch_operands = 0 : i64, tpu.core_type = #tpu.core_type<tc>, window_params = [{transform_indices = @transform_0, window_bounds = array<i64: 32, 1024>}, {pipeline_mode = #tpu.pipeline_mode<synchronous>, transform_indices = @transform_1, window_bounds = array<i64: 8, 32>}, {transform_indices = @transform_2, window_bounds = array<i64: 1, 1>}, {transform_indices = @transform_3, window_bounds = array<i64: 1, 1024>}]} {
    %c0 = arith.constant 0 : index
    %c0_0 = arith.constant 0 : index
    %0 = vector.load %arg2[%c0, %c0_0] : memref<8x32xbf16, #tpu.memory_space<vmem>>, vector<8x32xbf16>
    %c0_1 = arith.constant 0 : index
    %c0_2 = arith.constant 0 : index
    %1 = vector.load %arg1[%c0_1, %c0_2] : memref<32x1024xbf16, #tpu.memory_space<vmem>>, vector<32x1024xbf16>
    %cst = arith.constant dense<0.000000e+00> : vector<8x1024xf32>
    %2 = tpu.matmul %0, %1, %cst {dimension_numbers = #tpu.dot_dimension_numbers<[1], [0], [0], [1], [0, 0, 1, 1], [], []>} : vector<8x32xbf16>, vector<32x1024xbf16>, vector<8x1024xf32> -> vector<8x1024xf32>
    %3 = vector.extract_strided_slice %2 {offsets = [0, 0], sizes = [1, 1024], strides = [1, 1]} : vector<8x1024xf32> to vector<1x1024xf32>
    %c0_3 = arith.constant 0 : index
    %c0_4 = arith.constant 0 : index
    %4 = memref.load %arg3[%c0_3, %c0_4] : memref<1x1xf32, #tpu.memory_space<smem>>
    %5 = vector.broadcast %4 : f32 to vector<1x1024xf32>
    %6 = arith.addf %3, %5 : vector<1x1024xf32>
    %7 = arith.negf %6 : vector<1x1024xf32>
    %8 = math.exp %7 : vector<1x1024xf32>
    %cst_5 = arith.constant 1.000000e+00 : f32
    %9 = vector.broadcast %cst_5 : f32 to vector<1x1024xf32>
    %10 = arith.addf %9, %8 : vector<1x1024xf32>
    %11 = arith.divf %9, %10 : vector<1x1024xf32>
    %c0_6 = arith.constant 0 : index
    %c0_7 = arith.constant 0 : index
    %12 = vector.load %arg4[%c0_6, %c0_7] : memref<1x1024xf32, #tpu.memory_space<vmem>>, vector<1x1024xf32>
    tpu.vector_store %arg4[%c0_6, %c0_7], %11 {strides = array<i32>} : memref<1x1024xf32, #tpu.memory_space<vmem>>, vector<1x1024xf32>,
    return
  }
  func.func @transform_0(%arg0: i32) -> (i32, i32) {
    %c0_i32 = arith.constant 0 : i32
    %c0_i32_0 = arith.constant 0 : i32
    return %c0_i32, %arg0 : i32, i32
  }
  func.func @transform_1(%arg0: i32) -> (i32, i32) {
    %c0_i32 = arith.constant 0 : i32
    %c0_i32_0 = arith.constant 0 : i32
    %c0_i32_1 = arith.constant 0 : i32
    return %c0_i32, %c0_i32_0 : i32, i32
  }
  func.func @transform_2(%arg0: i32) -> (i32, i32) {
    %c0_i32 = arith.constant 0 : i32
    %c0_i32_0 = arith.constant 0 : i32
    %c0_i32_1 = arith.constant 0 : i32
    return %c0_i32, %c0_i32_0 : i32, i32
  }
  func.func @transform_3(%arg0: i32) -> (i32, i32) {
    %c0_i32 = arith.constant 0 : i32
    %c0_i32_0 = arith.constant 0 : i32
    return %c0_i32, %arg0 : i32, i32
  }
}

</mosaic_0001>

<llo_original>
// kernel: mlp_forward.1
$region0: #{mlp_forward.1}
  #allocation0 [shape = 'u32[]', space=smem, size = 0x4, offset = 0x4, fixed_abs, tag = 'smem constant byte address 0x4 - core index']
  #allocation1 [shape = 'u32[72,128]{1,0:T(1,128)}', space=vmem, size = 0x9000, scoped, tag = 'internal scratch']
  #allocation2 [shape = 'f32[1,1]{1,0:T(1,128)S(6)}', space=smem, size = 0x200, scoped, tag = 'scoped memory for mlp_forward.1']
  %s0 = inlined_call_operand.vmem [shape: bf16[32,1500], index: 0, kind: input, shape index: {}]
  %s1 = inlined_call_operand.vmem [shape: bf16[8,32], index: 1, kind: input, shape index: {}]
  %s2 = inlined_call_operand.<no memory space> [shape: f32[1,1], index: 2, kind: input, shape index: {}]
  %s3 = inlined_call_operand.hbm [shape: f32[1,1500], index: 3, kind: output, shape index: {}]
  %s4 = sld [smem:[#allocation0]]
  $region111: #{mlp_forward.1} parent=0
    _
  %s6 = ssub.s32 1, %s4
  %s7 = scalar_select 0, %s6, %s4
  %8 = sst [smem:[#allocation2]] %s2
  $region1: #{mlp_forward.1} parent=0
    #allocation3 [shape = 'u8[131072]{0}', space=vmem, size = 0x20000, scoped, tag = 'input window, operand 0']
    #allocation4 [shape = 'u8[8192]{0}', space=vmem, size = 0x2000, scoped, tag = 'output window, operand 0']
    #allocation5 [shape = 's32[2]{0}', space=sflag, size = 0x8, scoped, tag = 'scoped memory for mlp_forward.1']
    %9 = vsyncpa [#allocation5], 0
    %s10 = scalar_lea.sflag [#allocation5], 1
    %11 = vsyncpa %s10, 0
    loop: start=0, step=1, limit=4
    $region2: #{mlp_forward.1} parent=1 // loop_pre_header
      _
    $region3: #{mlp_forward.1} parent=1 // loop_header
      %s13 = sphi 0, %s17
      %p14 = scmp.ge.s32.totalorder %s13, 4
      %s23 = sphi 0, %s25
      %s26 = sphi 0, %s23
      %s27 = sphi 0, %s26
      %s43 = sphi 0, %s27
      %s47 = sphi 0, %s47
      %s49 = sphi 0, %s47
      %s50 = sphi 0, %s49
      %s64 = sphi 0, %s50
      %s68 = sphi 0, %s68
      %s70 = sphi 0, %s68
      %s71 = sphi 0, %s70
      %s85 = sphi 0, %s71
      %s91 = sphi 0, %s93
      %s94 = sphi 0, %s91
      %s95 = sphi 0, %s94
      %s111 = sphi 0, %s95
    $region4: #{mlp_forward.1} parent=1 // loop_header_branch
      %16 = sbr.rel (%p14) target = $region8
    $region5: #{mlp_forward.1} parent=1 // loop_body
      %s18 = ssub.s32 %s13, 1
      %s19 = ssub.s32 %s13, 2
      %s20 = sadd.s32 %s13, 1
      %s21 = ssub.s32 %s13, %s20
      %p22 = scmp.eq.s32.totalorder %s21, 0
      %s24 = sadd.s32 %s23, 1
      %s25 = scalar_select %p22, %s23, %s24
      %p28 = pneg %p22
      %p29 = scmp.eq.s32.totalorder %s13, 1
      %p30 = por %p28, %p29
      %p31 = scmp.ne.s32.totalorder %s23, %s26
      %p32 = scmp.eq.s32.totalorder %s13, 0
      %p33 = por %p31, %p32
      %p34 = scmp.ne.s32.totalorder %s23, %s26
      %p35 = scmp.eq.s32.totalorder %s18, 1
      %p36 = por %p34, %p35
      %p37 = scmp.ne.s32.totalorder %s26, %s27
      %p38 = scmp.eq.s32.totalorder %s18, 0
      %p39 = por %p37, %p38
      %p40 = scmp.ne.s32.totalorder %s26, %s27
      %p41 = scmp.eq.s32.totalorder %s19, 1
      %p42 = por %p40, %p41
      %p44 = scmp.ne.s32.totalorder %s27, %s43
      %p45 = scmp.eq.s32.totalorder %s19, 0
      %p46 = por %p44, %p45
      %s48 = sadd.s32 %s47, 1
      %p51 = scmp.eq.s32.totalorder %s13, 1
      %p52 = scmp.ne.s32.totalorder %s47, %s49
      %p53 = scmp.eq.s32.totalorder %s13, 0
      %p54 = por %p52, %p53
      %p55 = scmp.ne.s32.totalorder %s47, %s49
      %p56 = scmp.eq.s32.totalorder %s18, 1
      %p57 = por %p55, %p56
      %p58 = scmp.ne.s32.totalorder %s49, %s50
      %p59 = scmp.eq.s32.totalorder %s18, 0
      %p60 = por %p58, %p59
      %p61 = scmp.ne.s32.totalorder %s49, %s50
      %p62 = scmp.eq.s32.totalorder %s19, 1
      %p63 = por %p61, %p62
      %p65 = scmp.ne.s32.totalorder %s50, %s64
      %p66 = scmp.eq.s32.totalorder %s19, 0
      %p67 = por %p65, %p66
      %s69 = sadd.s32 %s68, 1
      %p72 = scmp.eq.s32.totalorder %s13, 1
      %p73 = scmp.ne.s32.totalorder %s68, %s70
      %p74 = scmp.eq.s32.totalorder %s13, 0
      %p75 = por %p73, %p74
      %p76 = scmp.ne.s32.totalorder %s68, %s70
      %p77 = scmp.eq.s32.totalorder %s18, 1
      %p78 = por %p76, %p77
      %p79 = scmp.ne.s32.totalorder %s70, %s71
      %p80 = scmp.eq.s32.totalorder %s18, 0
      %p81 = por %p79, %p80
      %p82 = scmp.ne.s32.totalorder %s70, %s71
      %p83 = scmp.eq.s32.totalorder %s19, 1
      %p84 = por %p82, %p83
      %p86 = scmp.ne.s32.totalorder %s71, %s85
      %p87 = scmp.eq.s32.totalorder %s19, 0
      %p88 = por %p86, %p87
      %s89 = ssub.s32 %s13, %s20
      %p90 = scmp.eq.s32.totalorder %s89, 0
      %s92 = sadd.s32 %s91, 1
      %s93 = scalar_select %p90, %s91, %s92
      %p96 = pneg %p90
      %p97 = scmp.eq.s32.totalorder %s13, 1
      %p98 = por %p96, %p97
      %p99 = scmp.ne.s32.totalorder %s91, %s94
      %p100 = scmp.eq.s32.totalorder %s13, 0
      %p101 = por %p99, %p100
      %p102 = scmp.ne.s32.totalorder %s91, %s94
      %p103 = scmp.eq.s32.totalorder %s18, 1
      %p104 = por %p102, %p103
      %p105 = scmp.ne.s32.totalorder %s94, %s95
      %p106 = scmp.eq.s32.totalorder %s18, 0
      %p107 = por %p105, %p106
      %p108 = scmp.ne.s32.totalorder %s94, %s95
      %p109 = scmp.eq.s32.totalorder %s19, 1
      %p110 = por %p108, %p109
      %p112 = scmp.ne.s32.totalorder %s95, %s111
      %p113 = scmp.eq.s32.totalorder %s19, 0
      %p114 = por %p112, %p113
      %p115 = scmp.le.s32.totalorder 1, %s13
      %p116 = scmp.lt.s32.totalorder %s13, 3
      %p117 = pnand %p115, %p116
      %p118 = pneg %p117
      // Predicated region
      $region9: #{mlp_forward.1} parent=5 // pred_check
        _
      $region10: #{mlp_forward.1} parent=5 // pred_check_branch
        %120 = sbr.rel (%p117) target = $region12
      $region11: #{mlp_forward.1} parent=5 // pred_region
        %s121 = ssub.s32 %s13, 1
        // Predicated region
        $region13: #{mlp_forward.1} parent=11 // pred_check
          %p122 = pneg %p60
        $region14: #{mlp_forward.1} parent=11 // pred_check_branch
          %124 = sbr.rel (%p122) target = $region16
        $region15: #{mlp_forward.1} parent=11 // pred_region
          _
        $region16: #{mlp_forward.1} parent=11 // pred_fallthru
          _
        // Predicated region
        $region17: #{mlp_forward.1} parent=11 // pred_check
          %p125 = pneg %p81
        $region18: #{mlp_forward.1} parent=11 // pred_check_branch
          %127 = sbr.rel (%p125) target = $region20
        $region19: #{mlp_forward.1} parent=11 // pred_region
          _
        $region20: #{mlp_forward.1} parent=11 // pred_fallthru
          _
      $region12: #{mlp_forward.1} parent=5 // pred_fallthru
        _
      %p128 = scmp.lt.s32.totalorder %s13, 2
      // Predicated region
      $region21: #{mlp_forward.1} parent=5 // pred_check
        %p129 = pneg %p128
      $region22: #{mlp_forward.1} parent=5 // pred_check_branch
        %131 = sbr.rel (%p129) target = $region24
      $region23: #{mlp_forward.1} parent=5 // pred_region
        // Predicated region
        $region25: #{mlp_forward.1} parent=23 // pred_check
          %p132 = pneg %p33
        $region26: #{mlp_forward.1} parent=23 // pred_check_branch
          %134 = sbr.rel (%p132) target = $region28
        $region27: #{mlp_forward.1} parent=23 // pred_region
          %s135 = sand.u32 %s23, 1
          %s136 = sand.u32 %s23, 1
          %s137 = smul.addr %s136, 128
          %s138 = scalar_lea.vmem [#allocation3], %s137
          %s139 = smul.u32 8, %s13
          %s140 = ssub.s32 12, %s139
          %p141 = scmp.lt.s32.totalorder %s140, 8
          %s142 = scalar_select %p141, %s140, 8
          %s143 = smul.u32 16, %s142
          %p144 = scmp.ne.s32.totalorder 0, %s143
          %s145 = smul.addr %s139, 4
          %s146 = scalar_lea.vmem %s0, %s145
          %s147 = smul.u32 %s142, 4
          // Predicated region
          $region29: #{mlp_forward.1} parent=27 // pred_check
            %p148 = pneg %p144
          $region30: #{mlp_forward.1} parent=27 // pred_check_branch
            %150 = sbr.rel (%p148) target = $region32
          $region31: #{mlp_forward.1} parent=27 // pred_region
            %p151 = scmp.lt.u32.totalorder %s147, 8
            %p152 = pneg %p151
            // Predicated region
            $region33: #{mlp_forward.1} parent=31 // pred_check
              _
            $region34: #{mlp_forward.1} parent=31 // pred_check_branch
              %154 = sbr.rel (%p151) target = $region36
            $region35: #{mlp_forward.1} parent=31 // pred_region
              %s176 = sand.u32 %s147, 7
              %p177 = scmp.eq.s32.totalorder %s176, 0
              // Predicated region
              $region48: #{mlp_forward.1} parent=35 // pred_check
                %p178 = pneg %p177
              $region49: #{mlp_forward.1} parent=35 // pred_check_branch
                %180 = sbr.rel (%p178) target = $region51
              $region50: #{mlp_forward.1} parent=35 // pred_region
                %s181 = sshrl.u32 %s147, 3
                %s182 = sshrl.u32 %s181, 3
                // While loop
                $region52: #{mlp_forward.1} parent=50 // loop_pre_header
                  _
                $region53: #{mlp_forward.1} parent=50 // loop_header
                  %s184 = sphi 0, %s186
                  %p185 = scmp.ge.s32.totalorder %s184, %s182
                  %s189 = sphi 0, %s258
                  %s190 = sphi %s146, %s261
                  %s191 = sphi %s138, %s262
                $region54: #{mlp_forward.1} parent=50 // loop_header_branch
                  %188 = sbr.rel (%p185) target = $region58
                $region55: #{mlp_forward.1} parent=50 // loop_body
                  %v192 = vld [vmem:[%s190] sm:$0xff]
                  %193 = vst [vmem:[%s191] sm:$0xff] %v192
                  %v194 = vld [vmem:[%s190 + $0x8] sm:$0xff]
                  %195 = vst [vmem:[%s191 + $0x8] sm:$0xff] %v194
                  %v196 = vld [vmem:[%s190 + $0x10] sm:$0xff]
                  %197 = vst [vmem:[%s191 + $0x10] sm:$0xff] %v196
                  %v198 = vld [vmem:[%s190 + $0x18] sm:$0xff]
                  %199 = vst [vmem:[%s191 + $0x18] sm:$0xff] %v198
                  %v200 = vld [vmem:[%s190 + $0x20] sm:$0xff]
                  %201 = vst [vmem:[%s191 + $0x20] sm:$0xff] %v200
                  %v202 = vld [vmem:[%s190 + $0x28] sm:$0xff]
                  %203 = vst [vmem:[%s191 + $0x28] sm:$0xff] %v202
                  %v204 = vld [vmem:[%s190 + $0x30] sm:$0xff]
                  %205 = vst [vmem:[%s191 + $0x30] sm:$0xff] %v204
                  %v206 = vld [vmem:[%s190 + $0x38] sm:$0xff]
                  %207 = vst [vmem:[%s191 + $0x38] sm:$0xff] %v206
                  %v208 = vld [vmem:[%s190 + $0x30] sm:$0xff]
                  %209 = vst [vmem:[%s191 + $0x20] sm:$0xff] %v208
                  %v210 = vld [vmem:[%s190 + $0x38] sm:$0xff]
                  %211 = vst [vmem:[%s191 + $0x28] sm:$0xff] %v210
                  %v212 = vld [vmem:[%s190 + $0x40] sm:$0xff]
                  %213 = vst [vmem:[%s191 + $0x30] sm:$0xff] %v212
                  %v214 = vld [vmem:[%s190 + $0x48] sm:$0xff]
                  %215 = vst [vmem:[%s191 + $0x38] sm:$0xff] %v214
                  %v216 = vld [vmem:[%s190 + $0x50] sm:$0xff]
                  %217 = vst [vmem:[%s191 + $0x40] sm:$0xff] %v216
                  %v218 = vld [vmem:[%s190 + $0x58] sm:$0xff]
                  %219 = vst [vmem:[%s191 + $0x48] sm:$0xff] %v218
                  %v220 = vld [vmem:[%s190 + $0x60] sm:$0xff]
                  %221 = vst [vmem:[%s191 + $0x50] sm:$0xff] %v220
                  %v222 = vld [vmem:[%s190 + $0x68] sm:$0xff]
                  %223 = vst [vmem:[%s191 + $0x58] sm:$0xff] %v222
                  %v224 = vld [vmem:[%s190 + $0x60] sm:$0xff]
                  %225 = vst [vmem:[%s191 + $0x40] sm:$0xff] %v224
                  %v226 = vld [vmem:[%s190 + $0x68] sm:$0xff]
                  %227 = vst [vmem:[%s191 + $0x48] sm:$0xff] %v226
                  %v228 = vld [vmem:[%s190 + $0x70] sm:$0xff]
                  %229 = vst [vmem:[%s191 + $0x50] sm:$0xff] %v228
                  %v230 = vld [vmem:[%s190 + $0x78] sm:$0xff]
                  %231 = vst [vmem:[%s191 + $0x58] sm:$0xff] %v230
                  %v232 = vld [vmem:[%s190 + $0x80] sm:$0xff]
                  %233 = vst [vmem:[%s191 + $0x60] sm:$0xff] %v232
                  %v234 = vld [vmem:[%s190 + $0x88] sm:$0xff]
                  %235 = vst [vmem:[%s191 + $0x68] sm:$0xff] %v234
                  %v236 = vld [vmem:[%s190 + $0x90] sm:$0xff]
                  %237 = vst [vmem:[%s191 + $0x70] sm:$0xff] %v236
                  %v238 = vld [vmem:[%s190 + $0x98] sm:$0xff]
                  %239 = vst [vmem:[%s191 + $0x78] sm:$0xff] %v238
                  %v240 = vld [vmem:[%s190 + $0x90] sm:$0xff]
                  %241 = vst [vmem:[%s191 + $0x60] sm:$0xff] %v240
                  %v242 = vld [vmem:[%s190 + $0x98] sm:$0xff]
                  %243 = vst [vmem:[%s191 + $0x68] sm:$0xff] %v242
                  %v244 = vld [vmem:[%s190 + $0xa0] sm:$0xff]
                  %245 = vst [vmem:[%s191 + $0x70] sm:$0xff] %v244
                  %v246 = vld [vmem:[%s190 + $0xa8] sm:$0xff]
                  %247 = vst [vmem:[%s191 + $0x78] sm:$0xff] %v246
                  %v248 = vld [vmem:[%s190 + $0xb0] sm:$0xff]
                  %249 = vst [vmem:[%s191 + $0x80] sm:$0xff] %v248
                  %v250 = vld [vmem:[%s190 + $0xb8] sm:$0xff]
                  %251 = vst [vmem:[%s191 + $0x88] sm:$0xff] %v250
                  %v252 = vld [vmem:[%s190 + $0xc0] sm:$0xff]
                  %253 = vst [vmem:[%s191 + $0x90] sm:$0xff] %v252
                  %v254 = vld [vmem:[%s190 + $0xc8] sm:$0xff]
                  %255 = vst [vmem:[%s191 + $0x98] sm:$0xff] %v254
                  %s256 = sadd.s32 1, %s189
                  %p257 = scmp.ge.s32.totalorder %s256, %s182
                  %s258 = scalar_select %p257, 0, %s256
                  %s259 = smul.u32 %s258, 64
                  %s260 = smul.u32 %s258, 64
                  %s261 = scalar_lea.vmem %s146, %s259
                  %s262 = scalar_lea.vmem %s138, %s260 [#allocation3]
                $region56: #{mlp_forward.1} parent=50 // loop_footer
                  %s186 = sadd.s32 %s184, 1
                $region57: #{mlp_forward.1} parent=50 // loop_footer_branch
                  %183 = sbr.rel target = $region53
                $region58: #{mlp_forward.1} parent=50 // loop_exit
                  _
                %s263 = sshrl.u32 %s181, 3
                %s264 = sand.u32 %s181, 7
                %s265 = smul.u32 %s263, 8
                %s266 = smul.u32 8, %s265
                %s267 = scalar_lea.vmem %s146, %s266
                %s268 = smul.u32 8, %s265
                %s269 = scalar_lea.vmem %s138, %s268 [#allocation3]
                // While loop
                $region59: #{mlp_forward.1} parent=50 // loop_pre_header
                  _
                $region60: #{mlp_forward.1} parent=50 // loop_header
                  %s271 = sphi 0, %s273
                  %p272 = scmp.ge.s32.totalorder %s271, %s264
                  %s276 = sphi 0, %s289
                  %s277 = sphi %s267, %s292
                  %s278 = sphi %s269, %s293
                $region61: #{mlp_forward.1} parent=50 // loop_header_branch
                  %275 = sbr.rel (%p272) target = $region65
                $region62: #{mlp_forward.1} parent=50 // loop_body
                  %v279 = vld [vmem:[%s277] sm:$0xff]
                  %280 = vst [vmem:[%s278] sm:$0xff] %v279
                  %v281 = vld [vmem:[%s277 + $0x30] sm:$0xff]
                  %282 = vst [vmem:[%s278 + $0x20] sm:$0xff] %v281
                  %v283 = vld [vmem:[%s277 + $0x60] sm:$0xff]
                  %284 = vst [vmem:[%s278 + $0x40] sm:$0xff] %v283
                  %v285 = vld [vmem:[%s277 + $0x90] sm:$0xff]
                  %286 = vst [vmem:[%s278 + $0x60] sm:$0xff] %v285
                  %s287 = sadd.s32 1, %s276
                  %p288 = scmp.ge.s32.totalorder %s287, %s264
                  %s289 = scalar_select %p288, 0, %s287
                  %s290 = smul.u32 %s289, 8
                  %s291 = smul.u32 %s289, 8
                  %s292 = scalar_lea.vmem %s267, %s290
                  %s293 = scalar_lea.vmem %s269, %s291 [#allocation3]
                $region63: #{mlp_forward.1} parent=50 // loop_footer
                  %s273 = sadd.s32 %s271, 1
                $region64: #{mlp_forward.1} parent=50 // loop_footer_branch
                  %270 = sbr.rel target = $region60
                $region65: #{mlp_forward.1} parent=50 // loop_exit
                  _
              $region51: #{mlp_forward.1} parent=35 // pred_fallthru
                _
              %p294 = pneg %p177
              // Predicated region
              $region66: #{mlp_forward.1} parent=35 // pred_check
                _
              $region67: #{mlp_forward.1} parent=35 // pred_check_branch
                %296 = sbr.rel (%p177) target = $region69
              $region68: #{mlp_forward.1} parent=35 // pred_region
                %s297 = sand.u32 %s147, 7
                %s298 = ssub.s32 %s147, %s297
                %s299 = scalar_lea.vmem %s146, %s298
                %s300 = ssub.s32 %s147, %s297
                %s301 = scalar_lea.vmem %s138, %s300 [#allocation3]
                %s302 = sshrl.u32 %s147, 3
                %s303 = sshrl.u32 %s302, 3
                // While loop
                $region70: #{mlp_forward.1} parent=68 // loop_pre_header
                  _
                $region71: #{mlp_forward.1} parent=68 // loop_header
                  %s305 = sphi 0, %s307
                  %p306 = scmp.ge.s32.totalorder %s305, %s303
                  %s310 = sphi 0, %s379
                  %s311 = sphi %s146, %s382
                  %s312 = sphi %s138, %s383
                $region72: #{mlp_forward.1} parent=68 // loop_header_branch
                  %309 = sbr.rel (%p306) target = $region76
                $region73: #{mlp_forward.1} parent=68 // loop_body
                  %v313 = vld [vmem:[%s311] sm:$0xff]
                  %314 = vst [vmem:[%s312] sm:$0xff] %v313
                  %v315 = vld [vmem:[%s311 + $0x8] sm:$0xff]
                  %316 = vst [vmem:[%s312 + $0x8] sm:$0xff] %v315
                  %v317 = vld [vmem:[%s311 + $0x10] sm:$0xff]
                  %318 = vst [vmem:[%s312 + $0x10] sm:$0xff] %v317
                  %v319 = vld [vmem:[%s311 + $0x18] sm:$0xff]
                  %320 = vst [vmem:[%s312 + $0x18] sm:$0xff] %v319
                  %v321 = vld [vmem:[%s311 + $0x20] sm:$0xff]
                  %322 = vst [vmem:[%s312 + $0x20] sm:$0xff] %v321
                  %v323 = vld [vmem:[%s311 + $0x28] sm:$0xff]
                  %324 = vst [vmem:[%s312 + $0x28] sm:$0xff] %v323
                  %v325 = vld [vmem:[%s311 + $0x30] sm:$0xff]
                  %326 = vst [vmem:[%s312 + $0x30] sm:$0xff] %v325
                  %v327 = vld [vmem:[%s311 + $0x38] sm:$0xff]
                  %328 = vst [vmem:[%s312 + $0x38] sm:$0xff] %v327
                  %v329 = vld [vmem:[%s311 + $0x30] sm:$0xff]
                  %330 = vst [vmem:[%s312 + $0x20] sm:$0xff] %v329
                  %v331 = vld [vmem:[%s311 + $0x38] sm:$0xff]
                  %332 = vst [vmem:[%s312 + $0x28] sm:$0xff] %v331
                  %v333 = vld [vmem:[%s311 + $0x40] sm:$0xff]
                  %334 = vst [vmem:[%s312 + $0x30] sm:$0xff] %v333
                  %v335 = vld [vmem:[%s311 + $0x48] sm:$0xff]
                  %336 = vst [vmem:[%s312 + $0x38] sm:$0xff] %v335
                  %v337 = vld [vmem:[%s311 + $0x50] sm:$0xff]
                  %338 = vst [vmem:[%s312 + $0x40] sm:$0xff] %v337
                  %v339 = vld [vmem:[%s311 + $0x58] sm:$0xff]
                  %340 = vst [vmem:[%s312 + $0x48] sm:$0xff] %v339
                  %v341 = vld [vmem:[%s311 + $0x60] sm:$0xff]
                  %342 = vst [vmem:[%s312 + $0x50] sm:$0xff] %v341
                  %v343 = vld [vmem:[%s311 + $0x68] sm:$0xff]
                  %344 = vst [vmem:[%s312 + $0x58] sm:$0xff] %v343
                  %v345 = vld [vmem:[%s311 + $0x60] sm:$0xff]
                  %346 = vst [vmem:[%s312 + $0x40] sm:$0xff] %v345
                  %v347 = vld [vmem:[%s311 + $0x68] sm:$0xff]
                  %348 = vst [vmem:[%s312 + $0x48] sm:$0xff] %v347
                  %v349 = vld [vmem:[%s311 + $0x70] sm:$0xff]
                  %350 = vst [vmem:[%s312 + $0x50] sm:$0xff] %v349
                  %v351 = vld [vmem:[%s311 + $0x78] sm:$0xff]
                  %352 = vst [vmem:[%s312 + $0x58] sm:$0xff] %v351
                  %v353 = vld [vmem:[%s311 + $0x80] sm:$0xff]
                  %354 = vst [vmem:[%s312 + $0x60] sm:$0xff] %v353
                  %v355 = vld [vmem:[%s311 + $0x88] sm:$0xff]
                  %356 = vst [vmem:[%s312 + $0x68] sm:$0xff] %v355
                  %v357 = vld [vmem:[%s311 + $0x90] sm:$0xff]
                  %358 = vst [vmem:[%s312 + $0x70] sm:$0xff] %v357
                  %v359 = vld [vmem:[%s311 + $0x98] sm:$0xff]
                  %360 = vst [vmem:[%s312 + $0x78] sm:$0xff] %v359
                  %v361 = vld [vmem:[%s311 + $0x90] sm:$0xff]
                  %362 = vst [vmem:[%s312 + $0x60] sm:$0xff] %v361
                  %v363 = vld [vmem:[%s311 + $0x98] sm:$0xff]
                  %364 = vst [vmem:[%s312 + $0x68] sm:$0xff] %v363
                  %v365 = vld [vmem:[%s311 + $0xa0] sm:$0xff]
                  %366 = vst [vmem:[%s312 + $0x70] sm:$0xff] %v365
                  %v367 = vld [vmem:[%s311 + $0xa8] sm:$0xff]
                  %368 = vst [vmem:[%s312 + $0x78] sm:$0xff] %v367
                  %v369 = vld [vmem:[%s311 + $0xb0] sm:$0xff]
                  %370 = vst [vmem:[%s312 + $0x80] sm:$0xff] %v369
                  %v371 = vld [vmem:[%s311 + $0xb8] sm:$0xff]
                  %372 = vst [vmem:[%s312 + $0x88] sm:$0xff] %v371
                  %v373 = vld [vmem:[%s311 + $0xc0] sm:$0xff]
                  %374 = vst [vmem:[%s312 + $0x90] sm:$0xff] %v373
                  %v375 = vld [vmem:[%s311 + $0xc8] sm:$0xff]
                  %376 = vst [vmem:[%s312 + $0x98] sm:$0xff] %v375
                  %s377 = sadd.s32 1, %s310
                  %p378 = scmp.ge.s32.totalorder %s377, %s303
                  %s379 = scalar_select %p378, 0, %s377
                  %s380 = smul.u32 %s379, 64
                  %s381 = smul.u32 %s379, 64
                  %s382 = scalar_lea.vmem %s146, %s380
                  %s383 = scalar_lea.vmem %s138, %s381 [#allocation3]
                $region74: #{mlp_forward.1} parent=68 // loop_footer
                  %s307 = sadd.s32 %s305, 1
                $region75: #{mlp_forward.1} parent=68 // loop_footer_branch
                  %304 = sbr.rel target = $region71
                $region76: #{mlp_forward.1} parent=68 // loop_exit
                  _
                %s384 = sshrl.u32 %s302, 3
                %s385 = sand.u32 %s302, 7
                %s386 = smul.u32 %s384, 8
                %s387 = smul.u32 8, %s386
                %s388 = scalar_lea.vmem %s146, %s387
                %s389 = smul.u32 8, %s386
                %s390 = scalar_lea.vmem %s138, %s389 [#allocation3]
                // While loop
                $region77: #{mlp_forward.1} parent=68 // loop_pre_header
                  _
                $region78: #{mlp_forward.1} parent=68 // loop_header
                  %s392 = sphi 0, %s394
                  %p393 = scmp.ge.s32.totalorder %s392, %s385
                  %s397 = sphi 0, %s410
                  %s398 = sphi %s388, %s413
                  %s399 = sphi %s390, %s414
                $region79: #{mlp_forward.1} parent=68 // loop_header_branch
                  %396 = sbr.rel (%p393) target = $region83
                $region80: #{mlp_forward.1} parent=68 // loop_body
                  %v400 = vld [vmem:[%s398] sm:$0xff]
                  %401 = vst [vmem:[%s399] sm:$0xff] %v400
                  %v402 = vld [vmem:[%s398 + $0x30] sm:$0xff]
                  %403 = vst [vmem:[%s399 + $0x20] sm:$0xff] %v402
                  %v404 = vld [vmem:[%s398 + $0x60] sm:$0xff]
                  %405 = vst [vmem:[%s399 + $0x40] sm:$0xff] %v404
                  %v406 = vld [vmem:[%s398 + $0x90] sm:$0xff]
                  %407 = vst [vmem:[%s399 + $0x60] sm:$0xff] %v406
                  %s408 = sadd.s32 1, %s397
                  %p409 = scmp.ge.s32.totalorder %s408, %s385
                  %s410 = scalar_select %p409, 0, %s408
                  %s411 = smul.u32 %s410, 8
                  %s412 = smul.u32 %s410, 8
                  %s413 = scalar_lea.vmem %s388, %s411
                  %s414 = scalar_lea.vmem %s390, %s412 [#allocation3]
                $region81: #{mlp_forward.1} parent=68 // loop_footer
                  %s394 = sadd.s32 %s392, 1
                $region82: #{mlp_forward.1} parent=68 // loop_footer_branch
                  %391 = sbr.rel target = $region78
                $region83: #{mlp_forward.1} parent=68 // loop_exit
                  _
                %s415 = sshll.u32 1, %s297
                %s416 = ssub.s32 %s415, 1
                loop: start=0, step=1, limit=1
                $region84: #{mlp_forward.1} parent=68 // loop_pre_header
                  _
                $region85: #{mlp_forward.1} parent=68 // loop_header
                  %s418 = sphi 0, %s422
                  %p419 = scmp.ge.s32.totalorder %s418, 1
                  %s423 = sphi %s299, %s299
                  %s424 = sphi %s301, %s301
                $region86: #{mlp_forward.1} parent=68 // loop_header_branch
                  %421 = sbr.rel (%p419) target = $region90
                $region87: #{mlp_forward.1} parent=68 // loop_body
                  %v425 = vld [vmem:[%s423] sm:%s416]
                  %426 = vst [vmem:[%s424] sm:%s416] %v425
                  %v427 = vld [vmem:[%s423 + $0x30] sm:%s416]
                  %428 = vst [vmem:[%s424 + $0x20] sm:%s416] %v427
                  %v429 = vld [vmem:[%s423 + $0x60] sm:%s416]
                  %430 = vst [vmem:[%s424 + $0x40] sm:%s416] %v429
                  %v431 = vld [vmem:[%s423 + $0x90] sm:%s416]
                  %432 = vst [vmem:[%s424 + $0x60] sm:%s416] %v431
                $region88: #{mlp_forward.1} parent=68 // loop_footer
                  %s422 = sadd.s32 1, %s418
                $region89: #{mlp_forward.1} parent=68 // loop_footer_branch
                  %417 = sbr.rel target = $region85
                $region90: #{mlp_forward.1} parent=68 // loop_exit
                  _
              $region69: #{mlp_forward.1} parent=35 // pred_fallthru
                _
            $region36: #{mlp_forward.1} parent=31 // pred_fallthru
              _
            // Predicated region
            $region37: #{mlp_forward.1} parent=31 // pred_check
              %p155 = pneg %p151
            $region38: #{mlp_forward.1} parent=31 // pred_check_branch
              %157 = sbr.rel (%p155) target = $region40
            $region39: #{mlp_forward.1} parent=31 // pred_region
              %s158 = sshll.u32 1, %s147
              %s159 = ssub.s32 %s158, 1
              loop: start=0, step=1, limit=1
              $region41: #{mlp_forward.1} parent=39 // loop_pre_header
                _
              $region42: #{mlp_forward.1} parent=39 // loop_header
                %s161 = sphi 0, %s165
                %p162 = scmp.ge.s32.totalorder %s161, 1
                %s166 = sphi %s146, %s146
                %s167 = sphi %s138, %s138
              $region43: #{mlp_forward.1} parent=39 // loop_header_branch
                %164 = sbr.rel (%p162) target = $region47
              $region44: #{mlp_forward.1} parent=39 // loop_body
                %v168 = vld [vmem:[%s166] sm:%s159]
                %169 = vst [vmem:[%s167] sm:%s159] %v168
                %v170 = vld [vmem:[%s166 + $0x30] sm:%s159]
                %171 = vst [vmem:[%s167 + $0x20] sm:%s159] %v170
                %v172 = vld [vmem:[%s166 + $0x60] sm:%s159]
                %173 = vst [vmem:[%s167 + $0x40] sm:%s159] %v172
                %v174 = vld [vmem:[%s166 + $0x90] sm:%s159]
                %175 = vst [vmem:[%s167 + $0x60] sm:%s159] %v174
              $region45: #{mlp_forward.1} parent=39 // loop_footer
                %s165 = sadd.s32 1, %s161
              $region46: #{mlp_forward.1} parent=39 // loop_footer_branch
                %160 = sbr.rel target = $region42
              $region47: #{mlp_forward.1} parent=39 // loop_exit
                _
            $region40: #{mlp_forward.1} parent=31 // pred_fallthru
              _
          $region32: #{mlp_forward.1} parent=27 // pred_fallthru
            _
          %433 = vnop
        $region28: #{mlp_forward.1} parent=23 // pred_fallthru
          _
      $region24: #{mlp_forward.1} parent=5 // pred_fallthru
        _
      %p434 = scmp.le.s32.totalorder 1, %s13
      %p435 = scmp.lt.s32.totalorder %s13, 3
      %p436 = pnand %p434, %p435
      %p437 = pneg %p436
      // Predicated region
      $region91: #{mlp_forward.1} parent=5 // pred_check
        _
      $region92: #{mlp_forward.1} parent=5 // pred_check_branch
        %439 = sbr.rel (%p436) target = $region94
      $region93: #{mlp_forward.1} parent=5 // pred_region
        %s440 = ssub.s32 %s13, 1
        %s441 = sand.u32 %s26, 1
        %s442 = sand.u32 %s26, 1
        %s443 = smul.addr %s442, 128
        %s444 = scalar_lea.vmem [#allocation3], %s443
        // Predicated region
        $region95: #{mlp_forward.1} parent=93 // pred_check
          %p445 = pneg %p39
        $region96: #{mlp_forward.1} parent=93 // pred_check_branch
          %447 = sbr.rel (%p445) target = $region98
        $region97: #{mlp_forward.1} parent=93 // pred_region
          _
        $region98: #{mlp_forward.1} parent=93 // pred_fallthru
          _
        %s448 = sand.u32 %s26, 1
        %s449 = sand.u32 %s26, 1
        %s450 = smul.addr %s449, 128
        %s451 = scalar_lea.vmem [#allocation3], %s450
        %p452 = pneg %p39
        %p453 = pneg %p36
        %p454 = pneg %p60
        %p455 = pneg %p57
        %p456 = pneg %p81
        %p457 = pneg %p78
        %p458 = pneg %p107
        %p459 = pneg %p104
        %s460 = sand.u32 %s94, 1
        %s461 = scalar_lea.sflag [#allocation5], %s460
        %s462 = sand.u32 %s94, 1
        %s463 = smul.addr %s462, 8
        %s464 = scalar_lea.vmem [#allocation4], %s463
        %s465 = smul.u32 8, %s18
        %s466 = ssub.s32 12, %s465
        %p467 = scmp.lt.s32.totalorder %s466, 8
        %s468 = scalar_select %p467, %s466, 8
        %s469 = smul.u32 16, %s468
        %s470 = smul.u32 8, %s18
        %s471 = ssub.s32 12, %s470
        %p472 = scmp.lt.s32.totalorder %s471, 8
        %s473 = scalar_select %p472, %s471, 8
        %v475 = vld [vmem:[%s1] sm:$0xf]
        %v476 = vld [vmem:[%s444] sm:$0xff]
        %v477 = vld [vmem:[%s444 + $0x8] sm:$0xff]
        %v478 = vld [vmem:[%s444 + $0x10] sm:$0xff]
        %v479 = vld [vmem:[%s444 + $0x18] sm:$0xff]
        %v480 = vld [vmem:[%s444 + $0x20] sm:$0xff]
        %v481 = vld [vmem:[%s444 + $0x28] sm:$0xff]
        %v482 = vld [vmem:[%s444 + $0x30] sm:$0xff]
        %v483 = vld [vmem:[%s444 + $0x38] sm:$0xff]
        %v484 = vld [vmem:[%s444 + $0x40] sm:$0xff]
        %v485 = vld [vmem:[%s444 + $0x48] sm:$0xff]
        %v486 = vld [vmem:[%s444 + $0x50] sm:$0xff]
        %v487 = vld [vmem:[%s444 + $0x58] sm:$0xff]
        %v488 = vld [vmem:[%s444 + $0x60] sm:$0xff]
        %v489 = vld [vmem:[%s444 + $0x68] sm:$0xff]
        %v490 = vld [vmem:[%s444 + $0x70] sm:$0xff]
        %v491 = vld [vmem:[%s444 + $0x78] sm:$0xff]
        %v508 = vunpack.c.l.b16 %v476
        %v509 = vunpack.c.h.b16 %v476
        %v510 = vunpack.c.l.b16 %v477
        %v511 = vunpack.c.h.b16 %v477
        %v512 = vunpack.c.l.b16 %v478
        %v513 = vunpack.c.h.b16 %v478
        %v514 = vunpack.c.l.b16 %v479
        %v515 = vunpack.c.h.b16 %v479
        %v516 = vunpack.c.l.b16 %v480
        %v517 = vunpack.c.h.b16 %v480
        %v518 = vunpack.c.l.b16 %v481
        %v519 = vunpack.c.h.b16 %v481
        %v520 = vunpack.c.l.b16 %v482
        %v521 = vunpack.c.h.b16 %v482
        %v522 = vunpack.c.l.b16 %v483
        %v523 = vunpack.c.h.b16 %v483
        %v524 = vunpack.c.l.b16 %v484
        %v525 = vunpack.c.h.b16 %v484
        %v526 = vunpack.c.l.b16 %v485
        %v527 = vunpack.c.h.b16 %v485
        %v528 = vunpack.c.l.b16 %v486
        %v529 = vunpack.c.h.b16 %v486
        %v530 = vunpack.c.l.b16 %v487
        %v531 = vunpack.c.h.b16 %v487
        %v532 = vunpack.c.l.b16 %v488
        %v533 = vunpack.c.h.b16 %v488
        %v534 = vunpack.c.l.b16 %v489
        %v535 = vunpack.c.h.b16 %v489
        %v536 = vunpack.c.l.b16 %v490
        %v537 = vunpack.c.h.b16 %v490
        %v538 = vunpack.c.l.b16 %v491
        %v539 = vunpack.c.h.b16 %v491
        %v540 = vpack.c.b16 %v516, %v508
        %v541 = vpack.c.b16 %v517, %v509
        %v542 = vpack.c.b16 %v518, %v510
        %v543 = vpack.c.b16 %v519, %v511
        %v544 = vpack.c.b16 %v520, %v512
        %v545 = vpack.c.b16 %v521, %v513
        %v546 = vpack.c.b16 %v522, %v514
        %v547 = vpack.c.b16 %v523, %v515
        %v548 = vpack.c.b16 %v532, %v524
        %v549 = vpack.c.b16 %v533, %v525
        %v550 = vpack.c.b16 %v534, %v526
        %v551 = vpack.c.b16 %v535, %v527
        %v552 = vpack.c.b16 %v536, %v528
        %v553 = vpack.c.b16 %v537, %v529
        %v554 = vpack.c.b16 %v538, %v530
        %v555 = vpack.c.b16 %v539, %v531
        %vm572 = vcmask 261120
        %v574 = vsel %vm572, %v475, 0
        %576 = vmatpush.bf16.msra.mxu0 0
        %577 = vmatpush.bf16.msra.mxu0 0
        %578 = vmatpush.bf16.msra.mxu0 0
        %579 = vmatpush.bf16.msra.mxu0 0
        %580 = vmatpush.bf16.msra.mxu0 0
        %581 = vmatpush.bf16.msra.mxu0 0
        %582 = vmatpush.bf16.msra.mxu0 %v548
        %583 = vmatpush.bf16.msra.mxu0 %v540
        %584 = vmatmul.bf16.gmra.mxu0 %v574
        %v585 = vpop.f32.mrf.mxu0
        %v586 = vadd.f32 0.0, %v585
        %v587 = vpop.f32.mrf.mxu0
        %588 = vdwg.mxu0
        %589 = vmatpush.bf16.msra.mxu0 0
        %590 = vmatpush.bf16.msra.mxu0 0
        %591 = vmatpush.bf16.msra.mxu0 0
        %592 = vmatpush.bf16.msra.mxu0 0
        %593 = vmatpush.bf16.msra.mxu0 0
        %594 = vmatpush.bf16.msra.mxu0 0
        %595 = vmatpush.bf16.msra.mxu0 %v549
        %596 = vmatpush.bf16.msra.mxu0 %v541
        %597 = vmatmul.bf16.gmra.mxu0 %v574
        %v598 = vpop.f32.mrf.mxu0
        %v599 = vadd.f32 0.0, %v598
        %v600 = vpop.f32.mrf.mxu0
        %601 = vdwg.mxu0
        %602 = vmatpush.bf16.msra.mxu0 0
        %603 = vmatpush.bf16.msra.mxu0 0
        %604 = vmatpush.bf16.msra.mxu0 0
        %605 = vmatpush.bf16.msra.mxu0 0
        %606 = vmatpush.bf16.msra.mxu0 0
        %607 = vmatpush.bf16.msra.mxu0 0
        %608 = vmatpush.bf16.msra.mxu0 %v550
        %609 = vmatpush.bf16.msra.mxu0 %v542
        %610 = vmatmul.bf16.gmra.mxu0 %v574
        %v611 = vpop.f32.mrf.mxu0
        %v612 = vadd.f32 0.0, %v611
        %v613 = vpop.f32.mrf.mxu0
        %614 = vdwg.mxu0
        %615 = vmatpush.bf16.msra.mxu0 0
        %616 = vmatpush.bf16.msra.mxu0 0
        %617 = vmatpush.bf16.msra.mxu0 0
        %618 = vmatpush.bf16.msra.mxu0 0
        %619 = vmatpush.bf16.msra.mxu0 0
        %620 = vmatpush.bf16.msra.mxu0 0
        %621 = vmatpush.bf16.msra.mxu0 %v551
        %622 = vmatpush.bf16.msra.mxu0 %v543
        %623 = vmatmul.bf16.gmra.mxu0 %v574
        %v624 = vpop.f32.mrf.mxu0
        %v625 = vadd.f32 0.0, %v624
        %v626 = vpop.f32.mrf.mxu0
        %627 = vdwg.mxu0
        %628 = vmatpush.bf16.msra.mxu0 0
        %629 = vmatpush.bf16.msra.mxu0 0
        %630 = vmatpush.bf16.msra.mxu0 0
        %631 = vmatpush.bf16.msra.mxu0 0
        %632 = vmatpush.bf16.msra.mxu0 0
        %633 = vmatpush.bf16.msra.mxu0 0
        %634 = vmatpush.bf16.msra.mxu0 %v552
        %635 = vmatpush.bf16.msra.mxu0 %v544
        %636 = vmatmul.bf16.gmra.mxu0 %v574
        %v637 = vpop.f32.mrf.mxu0
        %v638 = vadd.f32 0.0, %v637
        %v639 = vpop.f32.mrf.mxu0
        %640 = vdwg.mxu0
        %641 = vmatpush.bf16.msra.mxu0 0
        %642 = vmatpush.bf16.msra.mxu0 0
        %643 = vmatpush.bf16.msra.mxu0 0
        %644 = vmatpush.bf16.msra.mxu0 0
        %645 = vmatpush.bf16.msra.mxu0 0
        %646 = vmatpush.bf16.msra.mxu0 0
        %647 = vmatpush.bf16.msra.mxu0 %v553
        %648 = vmatpush.bf16.msra.mxu0 %v545
        %649 = vmatmul.bf16.gmra.mxu0 %v574
        %v650 = vpop.f32.mrf.mxu0
        %v651 = vadd.f32 0.0, %v650
        %v652 = vpop.f32.mrf.mxu0
        %653 = vdwg.mxu0
        %654 = vmatpush.bf16.msra.mxu0 0
        %655 = vmatpush.bf16.msra.mxu0 0
        %656 = vmatpush.bf16.msra.mxu0 0
        %657 = vmatpush.bf16.msra.mxu0 0
        %658 = vmatpush.bf16.msra.mxu0 0
        %659 = vmatpush.bf16.msra.mxu0 0
        %660 = vmatpush.bf16.msra.mxu0 %v554
        %661 = vmatpush.bf16.msra.mxu0 %v546
        %662 = vmatmul.bf16.gmra.mxu0 %v574
        %v663 = vpop.f32.mrf.mxu0
        %v664 = vadd.f32 0.0, %v663
        %v665 = vpop.f32.mrf.mxu0
        %666 = vdwg.mxu0
        %667 = vmatpush.bf16.msra.mxu0 0
        %668 = vmatpush.bf16.msra.mxu0 0
        %669 = vmatpush.bf16.msra.mxu0 0
        %670 = vmatpush.bf16.msra.mxu0 0
        %671 = vmatpush.bf16.msra.mxu0 0
        %672 = vmatpush.bf16.msra.mxu0 0
        %673 = vmatpush.bf16.msra.mxu0 %v555
        %674 = vmatpush.bf16.msra.mxu0 %v547
        %675 = vmatmul.bf16.gmra.mxu0 %v574
        %v676 = vpop.f32.mrf.mxu0
        %v677 = vadd.f32 0.0, %v676
        %v678 = vpop.f32.mrf.mxu0
        %679 = vdwg.mxu0
        %s680 = sld [smem:[#allocation2]]
        %v681 = vstv %s680
        %v682 = vadd.f32 %v586, %v681
        %v683 = vadd.f32 %v599, %v681
        %v684 = vadd.f32 %v612, %v681
        %v685 = vadd.f32 %v625, %v681
        %v686 = vadd.f32 %v638, %v681
        %v687 = vadd.f32 %v651, %v681
        %v688 = vadd.f32 %v664, %v681
        %v689 = vadd.f32 %v677, %v681
        %v690 = vxor.u32 %v682, 2147483648
        %v691 = vxor.u32 %v683, 2147483648
        %v692 = vxor.u32 %v684, 2147483648
        %v693 = vxor.u32 %v685, 2147483648
        %v694 = vxor.u32 %v686, 2147483648
        %v695 = vxor.u32 %v687, 2147483648
        %v696 = vxor.u32 %v688, 2147483648
        %v697 = vxor.u32 %v689, 2147483648
        %v698 = vmul.f32 %v690, 1.442695
        %v699 = vpow.pop %v698
        %v700 = vmul.f32 %v691, 1.442695
        %v701 = vpow.pop %v700
        %v702 = vmul.f32 %v692, 1.442695
        %v703 = vpow.pop %v702
        %v704 = vmul.f32 %v693, 1.442695
        %v705 = vpow.pop %v704
        %v706 = vmul.f32 %v694, 1.442695
        %v707 = vpow.pop %v706
        %v708 = vmul.f32 %v695, 1.442695
        %v709 = vpow.pop %v708
        %v710 = vmul.f32 %v696, 1.442695
        %v711 = vpow.pop %v710
        %v712 = vmul.f32 %v697, 1.442695
        %v713 = vpow.pop %v712
        %v714 = vadd.f32 %v699, 1.0
        %v715 = vadd.f32 %v701, 1.0
        %v716 = vadd.f32 %v703, 1.0
        %v717 = vadd.f32 %v705, 1.0
        %v718 = vadd.f32 %v707, 1.0
        %v719 = vadd.f32 %v709, 1.0
        %v720 = vadd.f32 %v711, 1.0
        %v721 = vadd.f32 %v713, 1.0
        %v722 = vrcp.pop %v714
        %v723 = vmul.f32 %v714, %v722
        %v724 = vsub.f32 1.0, %v723
        %v725 = vmul.f32 %v722, %v724
        %v726 = vadd.f32 %v722, %v725
        %vm727 = vweird.f32 %v714
        %vm728 = vweird.f32 %v722
        %vm729 = vmor %vm727, %vm728
        %v730 = vsel %vm729, %v722, %v726
        %v731 = vand.u32 2147483647, %v714
        %vm732 = vcmp.eq.f32.partialorder %v731, 8.507059e+37
        %v733 = vand.u32 %v714, 2147483648
        %v734 = vor.u32 1.1754944e-38, %v733
        %v735 = vsel %vm732, %v734, %v730
        %v736 = vmul.f32 1.0, %v735
        %v737 = vrcp.pop %v715
        %v738 = vmul.f32 %v715, %v737
        %v739 = vsub.f32 1.0, %v738
        %v740 = vmul.f32 %v737, %v739
        %v741 = vadd.f32 %v737, %v740
        %vm742 = vweird.f32 %v715
        %vm743 = vweird.f32 %v737
        %vm744 = vmor %vm742, %vm743
        %v745 = vsel %vm744, %v737, %v741
        %v746 = vand.u32 2147483647, %v715
        %vm747 = vcmp.eq.f32.partialorder %v746, 8.507059e+37
        %v748 = vand.u32 %v715, 2147483648
        %v749 = vor.u32 1.1754944e-38, %v748
        %v750 = vsel %vm747, %v749, %v745
        %v751 = vmul.f32 1.0, %v750
        %v752 = vrcp.pop %v716
        %v753 = vmul.f32 %v716, %v752
        %v754 = vsub.f32 1.0, %v753
        %v755 = vmul.f32 %v752, %v754
        %v756 = vadd.f32 %v752, %v755
        %vm757 = vweird.f32 %v716
        %vm758 = vweird.f32 %v752
        %vm759 = vmor %vm757, %vm758
        %v760 = vsel %vm759, %v752, %v756
        %v761 = vand.u32 2147483647, %v716
        %vm762 = vcmp.eq.f32.partialorder %v761, 8.507059e+37
        %v763 = vand.u32 %v716, 2147483648
        %v764 = vor.u32 1.1754944e-38, %v763
        %v765 = vsel %vm762, %v764, %v760
        %v766 = vmul.f32 1.0, %v765
        %v767 = vrcp.pop %v717
        %v768 = vmul.f32 %v717, %v767
        %v769 = vsub.f32 1.0, %v768
        %v770 = vmul.f32 %v767, %v769
        %v771 = vadd.f32 %v767, %v770
        %vm772 = vweird.f32 %v717
        %vm773 = vweird.f32 %v767
        %vm774 = vmor %vm772, %vm773
        %v775 = vsel %vm774, %v767, %v771
        %v776 = vand.u32 2147483647, %v717
        %vm777 = vcmp.eq.f32.partialorder %v776, 8.507059e+37
        %v778 = vand.u32 %v717, 2147483648
        %v779 = vor.u32 1.1754944e-38, %v778
        %v780 = vsel %vm777, %v779, %v775
        %v781 = vmul.f32 1.0, %v780
        %v782 = vrcp.pop %v718
        %v783 = vmul.f32 %v718, %v782
        %v784 = vsub.f32 1.0, %v783
        %v785 = vmul.f32 %v782, %v784
        %v786 = vadd.f32 %v782, %v785
        %vm787 = vweird.f32 %v718
        %vm788 = vweird.f32 %v782
        %vm789 = vmor %vm787, %vm788
        %v790 = vsel %vm789, %v782, %v786
        %v791 = vand.u32 2147483647, %v718
        %vm792 = vcmp.eq.f32.partialorder %v791, 8.507059e+37
        %v793 = vand.u32 %v718, 2147483648
        %v794 = vor.u32 1.1754944e-38, %v793
        %v795 = vsel %vm792, %v794, %v790
        %v796 = vmul.f32 1.0, %v795
        %v797 = vrcp.pop %v719
        %v798 = vmul.f32 %v719, %v797
        %v799 = vsub.f32 1.0, %v798
        %v800 = vmul.f32 %v797, %v799
        %v801 = vadd.f32 %v797, %v800
        %vm802 = vweird.f32 %v719
        %vm803 = vweird.f32 %v797
        %vm804 = vmor %vm802, %vm803
        %v805 = vsel %vm804, %v797, %v801
        %v806 = vand.u32 2147483647, %v719
        %vm807 = vcmp.eq.f32.partialorder %v806, 8.507059e+37
        %v808 = vand.u32 %v719, 2147483648
        %v809 = vor.u32 1.1754944e-38, %v808
        %v810 = vsel %vm807, %v809, %v805
        %v811 = vmul.f32 1.0, %v810
        %v812 = vrcp.pop %v720
        %v813 = vmul.f32 %v720, %v812
        %v814 = vsub.f32 1.0, %v813
        %v815 = vmul.f32 %v812, %v814
        %v816 = vadd.f32 %v812, %v815
        %vm817 = vweird.f32 %v720
        %vm818 = vweird.f32 %v812
        %vm819 = vmor %vm817, %vm818
        %v820 = vsel %vm819, %v812, %v816
        %v821 = vand.u32 2147483647, %v720
        %vm822 = vcmp.eq.f32.partialorder %v821, 8.507059e+37
        %v823 = vand.u32 %v720, 2147483648
        %v824 = vor.u32 1.1754944e-38, %v823
        %v825 = vsel %vm822, %v824, %v820
        %v826 = vmul.f32 1.0, %v825
        %v827 = vrcp.pop %v721
        %v828 = vmul.f32 %v721, %v827
        %v829 = vsub.f32 1.0, %v828
        %v830 = vmul.f32 %v827, %v829
        %v831 = vadd.f32 %v827, %v830
        %vm832 = vweird.f32 %v721
        %vm833 = vweird.f32 %v827
        %vm834 = vmor %vm832, %vm833
        %v835 = vsel %vm834, %v827, %v831
        %v836 = vand.u32 2147483647, %v721
        %vm837 = vcmp.eq.f32.partialorder %v836, 8.507059e+37
        %v838 = vand.u32 %v721, 2147483648
        %v839 = vor.u32 1.1754944e-38, %v838
        %v840 = vsel %vm837, %v839, %v835
        %v841 = vmul.f32 1.0, %v840
        %v850 = vrot.slane %v751, 7
        %v851 = vrot.slane %v766, 6
        %v852 = vrot.slane %v781, 5
        %v853 = vrot.slane %v796, 4
        %v854 = vrot.slane %v811, 3
        %v855 = vrot.slane %v826, 2
        %v856 = vrot.slane %v841, 1
        %vm857 = vcmask 1040384
        %v858 = vsel %vm857, %v736, %v850
        %vm859 = vcmask 1042434
        %v860 = vsel %vm859, %v851, %v852
        %vm861 = vcmask 1041408
        %v862 = vsel %vm861, %v858, %v860
        %vm863 = vcmask 1044484
        %v864 = vsel %vm863, %v853, %v854
        %vm865 = vcmask 1046534
        %v866 = vsel %vm865, %v855, %v856
        %vm867 = vcmask 1045508
        %v868 = vsel %vm867, %v864, %v866
        %vm869 = vcmask 1043456
        %v870 = vsel %vm869, %v862, %v868
        %872 = vst [vmem:[%s464] sm:$0xff] %v870
        %s873 = sand.u32 %s94, 1
        %s874 = scalar_lea.sflag [#allocation5], %s873
        %s875 = sand.u32 %s94, 1
        %s876 = smul.addr %s875, 8
        %s877 = scalar_lea.vmem [#allocation4], %s876
        // Predicated region
        $region99: #{mlp_forward.1} parent=93 // pred_check
          %p878 = pneg %p104
        $region100: #{mlp_forward.1} parent=93 // pred_check_branch
          %880 = sbr.rel (%p878) target = $region102
        $region101: #{mlp_forward.1} parent=93 // pred_region
          %s881 = smul.u32 8, %s18
          %s882 = ssub.s32 12, %s881
          %p883 = scmp.lt.s32.totalorder %s882, 8
          %s884 = scalar_select %p883, %s882, 8
          %s885 = ssub.s32 8, %s884
          %s886 = sshll.u32 %s885, 4
          %887 = vsyncadd %s874, %s886
          %p888 = scmp.ne.s32.totalorder 0, %s884
          %s889 = scalar_lea.hbm %s3, %s881
          %s890 = sshll.u32 %s884, 4
          %s891 = sshll.u32 %s877, 4
          %s892 = int_to_ptr.vmem [resolvable:$true] %s891
          %s893 = sshll.u32 %s889, 4
          %s894 = int_to_ptr.hbm [resolvable:$true] %s893
          %896 = dma.vmem_to_hbm [thread:$0]  (%p888), %s892, %s890, %s894, %s874
        $region102: #{mlp_forward.1} parent=93 // pred_fallthru
          _
      $region94: #{mlp_forward.1} parent=5 // pred_fallthru
        _
      %p897 = scmp.le.s32.totalorder 2, %s13
      // Predicated region
      $region103: #{mlp_forward.1} parent=5 // pred_check
        %p898 = pneg %p897
      $region104: #{mlp_forward.1} parent=5 // pred_check_branch
        %900 = sbr.rel (%p898) target = $region106
      $region105: #{mlp_forward.1} parent=5 // pred_region
        %s901 = ssub.s32 %s13, 2
        // Predicated region
        $region107: #{mlp_forward.1} parent=105 // pred_check
          %p902 = pneg %p110
        $region108: #{mlp_forward.1} parent=105 // pred_check_branch
          %904 = sbr.rel (%p902) target = $region110
        $region109: #{mlp_forward.1} parent=105 // pred_region
          %s905 = sand.u32 %s95, 1
          %s906 = scalar_lea.sflag [#allocation5], %s905
          %s907 = sand.u32 %s95, 1
          %s908 = smul.addr %s907, 8
          %s909 = scalar_lea.vmem [#allocation4], %s908
          %911 = dma.done %s906, 128
        $region110: #{mlp_forward.1} parent=105 // pred_fallthru
          _
      $region106: #{mlp_forward.1} parent=5 // pred_fallthru
        _
    $region6: #{mlp_forward.1} parent=1 // loop_footer
      %s17 = sadd.s32 1, %s13
    $region7: #{mlp_forward.1} parent=1 // loop_footer_branch
      %12 = sbr.rel target = $region3
    $region8: #{mlp_forward.1} parent=1 // loop_exit
      _
    %912 = vsyncpa [#allocation5], 1
    %s913 = scalar_lea.sflag [#allocation5], 1
    %914 = vsyncpa %s913, 1

</llo_original>
